<compile_context>
chip_gen: v6e
topology: v6e:2x2x1
jax: 0.10.0
libtpu: 0.0.40
codegen_flags: <defaults>
</compile_context>

<pallas_src>
import math

import jax
import jax.numpy as jnp
from jax.experimental import pallas as pl
from jax.experimental.pallas import tpu as pltpu


_FEATURES = ("user", "poi", "category", "dayofweek", "hourofday")
_COLUMNS = (0, 1, 2, 6, 7)


def _round_up(x, m):
    return (x + m - 1) // m * m


def _checkin_kernel(idx_ref, table_ref, out_ref):
    """One grid step handles a tile of TN check-in rows.

    idx_ref   : (TN, 5)  int32  -- per-feature indices with fused-vocab offsets added
    table_ref : (K, OUT) bf16   -- packed (block-diag / stacked) embedding table
    out_ref   : (TN, OUT) bf16
    """
    tn = idx_ref.shape[0]
    k = table_ref.shape[0]

    # Multi-hot over the fused vocab axis: 5 ones per row, in disjoint vocab regions.
    lane = jax.lax.broadcasted_iota(jnp.int32, (tn, k), 1)
    hot = lane == idx_ref[:, 0:1]                      # 2-D slice: no squeeze/rebroadcast
    for t in range(1, len(_FEATURES)):
        hot = hot | (lane == idx_ref[:, t:t + 1])
    onehot = hot.astype(table_ref.dtype)               # 0/1 is exact in bf16

    # One MXU matmul replaces 5 tiny lookups + concat/sum.  Accumulate f32, store bf16.
    out_ref[...] = jnp.dot(
        onehot, table_ref[...], preferred_element_type=jnp.float32
    ).astype(out_ref.dtype)


def _pack_tables(tables, fusion_type, embed_size, compute_dtype):
    """Pack the 5 tables into one (K_total, out_dim) table; return static offsets."""
    itemsize = jnp.dtype(compute_dtype).itemsize
    sub = 16 if itemsize == 2 else 8                   # sublane packing granule
    v_sizes = tuple(int(tables[name].shape[0]) for name in _FEATURES)
    v_pads = [_round_up(v, sub) for v in v_sizes]
    k_total = _round_up(sum(v_pads), 128)

    if fusion_type == "concat":
        out_dim = len(_FEATURES) * embed_size
    elif fusion_type == "add":
        out_dim = embed_size
    else:
        raise ValueError(f"Get wrong fusion type {fusion_type}")

    packed = jnp.zeros((k_total, out_dim), dtype=compute_dtype)
    offsets, row = [], 0
    for t, name in enumerate(_FEATURES):
        tab = jnp.asarray(tables[name], dtype=compute_dtype)
        v = v_sizes[t]
        col = t * embed_size if fusion_type == "concat" else 0
        packed = packed.at[row:row + v, col:col + embed_size].set(tab)
        offsets.append(row)
        row += v_pads[t]
    return packed, tuple(offsets), v_sizes, out_dim, k_total


def _choose_tile(n, max_tile):
    """Minimize row padding; prefer >= 2 grid steps (v7x megacore) when free."""
    candidates = [t for t in (128, 256, 512, 1024) if t <= max_tile] or [128]

    def key(t):
        n_pad = _round_up(max(n, 1), t)
        steps = n_pad // t
        single_step = 1 if (steps < 2 and n > 128) else 0
        return (n_pad, single_step, -t)

    return min(candidates, key=key)


def _table_block_spec(k_total, out_dim):
    # Constant index map -> a single buffer is enough; fall back if pipeline_mode
    # is unavailable in this JAX version.
    try:
        return pl.BlockSpec((k_total, out_dim), lambda i: (0, 0),
                            pipeline_mode=pl.Buffered(1))
    except TypeError:
        return pl.BlockSpec((k_total, out_dim), lambda i: (0, 0))


def make_checkin_embedding(tables, fusion_type, embed_size, *,
                           compute_dtype=jnp.bfloat16,
                           out_dtype=jnp.bfloat16,
                           max_tile=1024):
    """Pack tables ONCE (init time) and return a jitted forward function.

    tables : dict name -> (V, E) float32 array (padding row already zeroed,
             mirroring nn.Embedding(padding_idx=...)).
    data   : int array of shape (..., 8); columns 0,1,2,6,7 hold the
             user / poi / category / dayofweek / hourofday codes.
    """
    packed, offsets, v_sizes, out_dim, k_total = _pack_tables(
        tables, fusion_type, embed_size, compute_dtype)

    tab_itemsize = jnp.dtype(compute_dtype).itemsize
    out_itemsize = jnp.dtype(out_dtype).itemsize

    def apply(data):
        lead_shape = data.shape[:-1]
        n = math.prod(lead_shape) if lead_shape else 1

        # Per-feature clamp (an out-of-range code cannot alias into the next
        # feature's vocab region) + static fused-vocab offset; flatten rows.
        idx = jnp.stack(
            [jnp.clip(data[..., c].astype(jnp.int32), 0, v - 1) + off
             for c, v, off in zip(_COLUMNS, v_sizes, offsets)],
            axis=-1).reshape(n, len(_FEATURES))

        tile = _choose_tile(n, max_tile)
        n_pad = _round_up(n, tile)
        if n_pad != n:
            idx = jnp.pad(idx, ((0, n_pad - n), (0, 0)))

        # Snug VMEM budget: out double-buffer + idx double-buffer + single-buffered
        # table + one-hot intermediates, plus headroom.  (64 MiB would be the entire
        # per-TC VMEM on v7x.)
        out_lanes = _round_up(out_dim, 128)
        vmem_bytes = (2 * tile * out_lanes * out_itemsize
                      + 2 * tile * 128 * 4
                      + k_total * out_lanes * tab_itemsize
                      + 3 * tile * k_total * 4)
        vmem_limit = int(max(8 << 20, min(32 << 20, vmem_bytes + (4 << 20))))

        cost = pl.CostEstimate(
            flops=2 * n_pad * k_total * out_dim,
            transcendentals=0,
            bytes_accessed=(n_pad * len(_FEATURES) * 4
                            + k_total * out_dim * tab_itemsize
                            + n_pad * out_dim * out_itemsize),
        )

        # TODO(synk): for production-scale POI vocabs (1e4-1e6 rows) the one-hot
        # matmul becomes compute-bound and the packed table cannot stay VMEM-resident
        # (esp. v7x 64 MiB/TC with megacore duplication); switch to a gather path:
        # scalar-prefetched indices with a pl.Element row BlockSpec, or a
        # memory_space=pl.ANY table with manual double-buffered pltpu.make_async_copy
        # row fetches (or a blocked vocab grid axis with masked accumulation).
        out = pl.pallas_call(
            _checkin_kernel,
            out_shape=jax.ShapeDtypeStruct((n_pad, out_dim), out_dtype),
            grid_spec=pltpu.PrefetchScalarGridSpec(
                num_scalar_prefetch=0,
                grid=(n_pad // tile,),
                in_specs=[
                    pl.BlockSpec((tile, len(_FEATURES)), lambda i: (i, 0)),
                    _table_block_spec(k_total, out_dim),
                ],
                out_specs=pl.BlockSpec((tile, out_dim), lambda i: (i, 0)),
            ),
            compiler_params=pltpu.CompilerParams(
                dimension_semantics=("parallel",),
                vmem_limit_bytes=vmem_limit,
            ),
            cost_estimate=cost,
        )(idx, packed)

        # Columns are exact; only the (cheap, often no-op) leading-row slice remains.
        out = out[:n].reshape(lead_shape + (out_dim,))
        if fusion_type == "add":
            # Mirrors torch.squeeze(sum(embedding_list)): removes ALL size-1 dims.
            out = jnp.squeeze(out)
        return out

    return jax.jit(apply)


# ----------------------------------------------------------------------------- demo


def _make_tables(key, embed_size, sizes_and_padding):
    """nn.Embedding-style init: N(0,1), padding_idx row zeroed."""
    tables = {}
    for name, (num_rows, pad_idx) in sizes_and_padding.items():
        key, sub = jax.random.split(key)
        t = jax.random.normal(sub, (num_rows, embed_size), dtype=jnp.float32)
        t = t.at[pad_idx].set(0.0)
        tables[name] = t
    return tables


def _reference(data, tables, fusion_type, compute_dtype=jnp.bfloat16):
    # Reference uses the same bf16-rounded table values the kernel consumes.
    tabs = {k: v.astype(compute_dtype).astype(jnp.float32) for k, v in tables.items()}
    embs = [jnp.take(tabs[name], data[..., c].astype(jnp.int32), axis=0)
            for name, c in zip(_FEATURES, _COLUMNS)]
    if fusion_type == "concat":
        return jnp.concatenate(embs, axis=-1)
    return jnp.squeeze(sum(embs))


if __name__ == "__main__":
    embed_size = 32

    # Synthetic dataset_args
    num_user, num_poi, num_category = 10, 20, 6
    padding_user_id = padding_poi_id = padding_poi_category = 0
    padding_weekday_id = padding_hour_id = 0

    key = jax.random.PRNGKey(0)
    key, tkey = jax.random.split(key)
    tables = _make_tables(
        tkey, embed_size,
        {
            "user": (num_user + 1, padding_user_id),
            "poi": (num_poi + 1, padding_poi_id),
            "category": (num_category + 1, padding_poi_category),
            "dayofweek": (8, padding_weekday_id),
            "hourofday": (25, padding_hour_id),
        },
    )

    # data: (batch=2, seq=8, 8 feature columns), integer codes.
    B, S = 2, 8
    keys = jax.random.split(key, 5)
    data = jnp.zeros((B, S, 8), dtype=jnp.int32)
    data = data.at[..., 0].set(jax.random.randint(keys[0], (B, S), 0, num_user + 1))
    data = data.at[..., 1].set(jax.random.randint(keys[1], (B, S), 0, num_poi + 1))
    data = data.at[..., 2].set(jax.random.randint(keys[2], (B, S), 0, num_category + 1))
    data = data.at[..., 6].set(jax.random.randint(keys[3], (B, S), 0, 8))
    data = data.at[..., 7].set(jax.random.randint(keys[4], (B, S), 0, 25))

    # concat fusion
    fwd_concat = make_checkin_embedding(tables, "concat", embed_size)
    out_c = jax.block_until_ready(fwd_concat(data))
    ref_c = _reference(data, tables, "concat")
    assert out_c.shape == (B, S, 5 * embed_size), out_c.shape
    assert out_c.dtype == jnp.bfloat16, out_c.dtype
    assert jnp.allclose(out_c.astype(jnp.float32), ref_c, atol=1e-5), \
        "concat mismatch vs reference"

    # add fusion
    fwd_add = make_checkin_embedding(tables, "add", embed_size)
    out_a = jax.block_until_ready(fwd_add(data))
    ref_a = _reference(data, tables, "add")
    assert out_a.shape == ref_a.shape, (out_a.shape, ref_a.shape)
    assert jnp.allclose(out_a.astype(jnp.float32), ref_a, atol=3e-2), \
        "add mismatch vs reference"

    print("KERNEL_OK")
</pallas_src>

<mosaic_0001>
module attributes {stable_mosaic.version = 11 : i64} {
  func.func @_checkin_kernel(%arg0: i32, %arg1: memref<128x5xi32, #tpu.memory_space<vmem>>, %arg2: memref<128x160xbf16, #tpu.memory_space<vmem>>, %arg3: memref<128x160xbf16, #tpu.memory_space<vmem>>) attributes {dimension_semantics = [#tpu.dimension_semantics<parallel>], iteration_bounds = array<i64: 1>, scalar_prefetch = 0 : i64, scratch_operands = 0 : i64, tpu.core_type = #tpu.core_type<tc>, window_params = [{transform_indices = @transform_0, window_bounds = array<i64: 128, 5>}, {pipeline_mode = #tpu.pipeline_mode<synchronous>, transform_indices = @transform_1, window_bounds = array<i64: 128, 160>}, {transform_indices = @transform_2, window_bounds = array<i64: 128, 160>}]} {
    %0 = tpu.iota {dimensions = array<i32: 1>} : vector<128x128xi32>
    %c0 = arith.constant 0 : index
    %c0_0 = arith.constant 0 : index
    %1 = vector.load %arg1[%c0, %c0_0] : memref<128x5xi32, #tpu.memory_space<vmem>>, vector<128x1xi32>
    %2 = vector.broadcast %1 : vector<128x1xi32> to vector<128x128xi32>
    %3 = arith.cmpi eq, %0, %2 : vector<128x128xi32>
    %c0_1 = arith.constant 0 : index
    %c1 = arith.constant 1 : index
    %4 = vector.load %arg1[%c0_1, %c1] : memref<128x5xi32, #tpu.memory_space<vmem>>, vector<128x1xi32>
    %5 = vector.broadcast %4 : vector<128x1xi32> to vector<128x128xi32>
    %6 = arith.cmpi eq, %0, %5 : vector<128x128xi32>
    %7 = arith.ori %3, %6 : vector<128x128xi1>
    %c0_2 = arith.constant 0 : index
    %c2 = arith.constant 2 : index
    %8 = vector.load %arg1[%c0_2, %c2] : memref<128x5xi32, #tpu.memory_space<vmem>>, vector<128x1xi32>
    %9 = vector.broadcast %8 : vector<128x1xi32> to vector<128x128xi32>
    %10 = arith.cmpi eq, %0, %9 : vector<128x128xi32>
    %11 = arith.ori %7, %10 : vector<128x128xi1>
    %c0_3 = arith.constant 0 : index
    %c3 = arith.constant 3 : index
    %12 = vector.load %arg1[%c0_3, %c3] : memref<128x5xi32, #tpu.memory_space<vmem>>, vector<128x1xi32>
    %13 = vector.broadcast %12 : vector<128x1xi32> to vector<128x128xi32>
    %14 = arith.cmpi eq, %0, %13 : vector<128x128xi32>
    %15 = arith.ori %11, %14 : vector<128x128xi1>
    %c0_4 = arith.constant 0 : index
    %c4 = arith.constant 4 : index
    %16 = vector.load %arg1[%c0_4, %c4] : memref<128x5xi32, #tpu.memory_space<vmem>>, vector<128x1xi32>
    %17 = vector.broadcast %16 : vector<128x1xi32> to vector<128x128xi32>
    %18 = arith.cmpi eq, %0, %17 : vector<128x128xi32>
    %19 = arith.ori %15, %18 : vector<128x128xi1>
    %20 = arith.extui %19 : vector<128x128xi1> to vector<128x128xi32>
    %21 = arith.sitofp %20 : vector<128x128xi32> to vector<128x128xf32>
    %22 = arith.truncf %21 : vector<128x128xf32> to vector<128x128xbf16>
    %c0_5 = arith.constant 0 : index
    %c0_6 = arith.constant 0 : index
    %23 = vector.load %arg2[%c0_5, %c0_6] : memref<128x160xbf16, #tpu.memory_space<vmem>>, vector<128x160xbf16>
    %cst = arith.constant dense<0.000000e+00> : vector<128x160xf32>
    %24 = tpu.matmul %22, %23, %cst {dimension_numbers = #tpu.dot_dimension_numbers<[1], [0], [0], [1], [0, 0, 1, 1], [], []>} : vector<128x128xbf16>, vector<128x160xbf16>, vector<128x160xf32> -> vector<128x160xf32>
    %25 = arith.truncf %24 : vector<128x160xf32> to vector<128x160xbf16>
    %c0_7 = arith.constant 0 : index
    %c0_8 = arith.constant 0 : index
    %26 = vector.load %arg3[%c0_7, %c0_8] : memref<128x160xbf16, #tpu.memory_space<vmem>>, vector<128x160xbf16>
    tpu.vector_store %arg3[%c0_7, %c0_8], %25 {strides = array<i32>} : memref<128x160xbf16, #tpu.memory_space<vmem>>, vector<128x160xbf16>,
    return
  }
  func.func @transform_0(%arg0: i32) -> (i32, i32) {
    %c0_i32 = arith.constant 0 : i32
    %c0_i32_0 = arith.constant 0 : i32
    return %arg0, %c0_i32 : i32, i32
  }
  func.func @transform_1(%arg0: i32) -> (i32, i32) {
    %c0_i32 = arith.constant 0 : i32
    %c0_i32_0 = arith.constant 0 : i32
    %c0_i32_1 = arith.constant 0 : i32
    return %c0_i32, %c0_i32_0 : i32, i32
  }
  func.func @transform_2(%arg0: i32) -> (i32, i32) {
    %c0_i32 = arith.constant 0 : i32
    %c0_i32_0 = arith.constant 0 : i32
    return %arg0, %c0_i32 : i32, i32
  }
}

</mosaic_0001>

<llo_original>
// kernel: apply.1
$region0: #{apply.1}
  #allocation0 [shape = 'u32[]', space=smem, size = 0x4, offset = 0x4, fixed_abs, tag = 'smem constant byte address 0x4 - core index']
  #allocation1 [shape = 'u32[144,128]{1,0:T(1,128)}', space=vmem, size = 0x12000, scoped, tag = 'internal scratch']
  %s0 = inlined_call_operand.vmem [shape: s32[128,5], index: 0, kind: input, shape index: {}]
  %s1 = inlined_call_operand.vmem [shape: bf16[128,160], index: 1, kind: input, shape index: {}]
  %s2 = inlined_call_operand.vmem [shape: bf16[128,160], index: 2, kind: output, shape index: {}]
  %s3 = sld [smem:[#allocation0]]
  $region18: #{apply.1} parent=0
    _
  %s5 = ssub.s32 1, %s3
  %s6 = scalar_select 0, %s5, %s3
  // Predicated region
  $region2: #{apply.1} parent=0 // pred_check
    _
  $region3: #{apply.1} parent=0 // pred_check_branch
    %8 = sbr.rel (0) target = $region5
  $region4: #{apply.1} parent=0 // pred_region
    _
  $region5: #{apply.1} parent=0 // pred_fallthru
    _
  // Predicated region
  $region6: #{apply.1} parent=0 // pred_check
    _
  $region7: #{apply.1} parent=0 // pred_check_branch
    %10 = sbr.rel (0) target = $region9
  $region8: #{apply.1} parent=0 // pred_region
    _
  $region9: #{apply.1} parent=0 // pred_fallthru
    _
  %v12 = vlaneseq
  %v13 = vand.u32 %v12, 127
  %v14 = vld [vmem:[%s0] sm:$0xff]
  %v15 = vld [vmem:[%s0 + $0x8] sm:$0xff]
  %v16 = vld [vmem:[%s0 + $0x10] sm:$0xff]
  %v17 = vld [vmem:[%s0 + $0x18] sm:$0xff]
  %v18 = vld [vmem:[%s0 + $0x20] sm:$0xff]
  %v19 = vld [vmem:[%s0 + $0x28] sm:$0xff]
  %v20 = vld [vmem:[%s0 + $0x30] sm:$0xff]
  %v21 = vld [vmem:[%s0 + $0x38] sm:$0xff]
  %v22 = vld [vmem:[%s0 + $0x40] sm:$0xff]
  %v23 = vld [vmem:[%s0 + $0x48] sm:$0xff]
  %v24 = vld [vmem:[%s0 + $0x50] sm:$0xff]
  %v25 = vld [vmem:[%s0 + $0x58] sm:$0xff]
  %v26 = vld [vmem:[%s0 + $0x60] sm:$0xff]
  %v27 = vld [vmem:[%s0 + $0x68] sm:$0xff]
  %v28 = vld [vmem:[%s0 + $0x70] sm:$0xff]
  %v29 = vld [vmem:[%s0 + $0x78] sm:$0xff]
  %30 = vset.pattern.permute.xlu0 0
  %31 = vperm.xlu0 %30, %v14
  %v32 = vpop.permute.xlu0 %31
  %33 = vset.pattern.permute.xlu0 0
  %34 = vperm.xlu0 %33, %v15
  %v35 = vpop.permute.xlu0 %34
  %36 = vset.pattern.permute.xlu0 0
  %37 = vperm.xlu0 %36, %v16
  %v38 = vpop.permute.xlu0 %37
  %39 = vset.pattern.permute.xlu0 0
  %40 = vperm.xlu0 %39, %v17
  %v41 = vpop.permute.xlu0 %40
  %42 = vset.pattern.permute.xlu0 0
  %43 = vperm.xlu0 %42, %v18
  %v44 = vpop.permute.xlu0 %43
  %45 = vset.pattern.permute.xlu0 0
  %46 = vperm.xlu0 %45, %v19
  %v47 = vpop.permute.xlu0 %46
  %48 = vset.pattern.permute.xlu0 0
  %49 = vperm.xlu0 %48, %v20
  %v50 = vpop.permute.xlu0 %49
  %51 = vset.pattern.permute.xlu0 0
  %52 = vperm.xlu0 %51, %v21
  %v53 = vpop.permute.xlu0 %52
  %54 = vset.pattern.permute.xlu0 0
  %55 = vperm.xlu0 %54, %v22
  %v56 = vpop.permute.xlu0 %55
  %57 = vset.pattern.permute.xlu0 0
  %58 = vperm.xlu0 %57, %v23
  %v59 = vpop.permute.xlu0 %58
  %60 = vset.pattern.permute.xlu0 0
  %61 = vperm.xlu0 %60, %v24
  %v62 = vpop.permute.xlu0 %61
  %63 = vset.pattern.permute.xlu0 0
  %64 = vperm.xlu0 %63, %v25
  %v65 = vpop.permute.xlu0 %64
  %66 = vset.pattern.permute.xlu0 0
  %67 = vperm.xlu0 %66, %v26
  %v68 = vpop.permute.xlu0 %67
  %69 = vset.pattern.permute.xlu0 0
  %70 = vperm.xlu0 %69, %v27
  %v71 = vpop.permute.xlu0 %70
  %72 = vset.pattern.permute.xlu0 0
  %73 = vperm.xlu0 %72, %v28
  %v74 = vpop.permute.xlu0 %73
  %75 = vset.pattern.permute.xlu0 0
  %76 = vperm.xlu0 %75, %v29
  %v77 = vpop.permute.xlu0 %76
  %vm78 = vcmp.eq.s32.totalorder %v13, %v32
  %vm79 = vcmp.eq.s32.totalorder %v13, %v35
  %vm80 = vcmp.eq.s32.totalorder %v13, %v38
  %vm81 = vcmp.eq.s32.totalorder %v13, %v41
  %vm82 = vcmp.eq.s32.totalorder %v13, %v44
  %vm83 = vcmp.eq.s32.totalorder %v13, %v47
  %vm84 = vcmp.eq.s32.totalorder %v13, %v50
  %vm85 = vcmp.eq.s32.totalorder %v13, %v53
  %vm86 = vcmp.eq.s32.totalorder %v13, %v56
  %vm87 = vcmp.eq.s32.totalorder %v13, %v59
  %vm88 = vcmp.eq.s32.totalorder %v13, %v62
  %vm89 = vcmp.eq.s32.totalorder %v13, %v65
  %vm90 = vcmp.eq.s32.totalorder %v13, %v68
  %vm91 = vcmp.eq.s32.totalorder %v13, %v71
  %vm92 = vcmp.eq.s32.totalorder %v13, %v74
  %vm93 = vcmp.eq.s32.totalorder %v13, %v77
  %94 = vset.pattern.permute.xlu0 1
  %95 = vperm.xlu0 %94, %v14
  %v96 = vpop.permute.xlu0 %95
  %97 = vset.pattern.permute.xlu0 1
  %98 = vperm.xlu0 %97, %v15
  %v99 = vpop.permute.xlu0 %98
  %100 = vset.pattern.permute.xlu0 1
  %101 = vperm.xlu0 %100, %v16
  %v102 = vpop.permute.xlu0 %101
  %103 = vset.pattern.permute.xlu0 1
  %104 = vperm.xlu0 %103, %v17
  %v105 = vpop.permute.xlu0 %104
  %106 = vset.pattern.permute.xlu0 1
  %107 = vperm.xlu0 %106, %v18
  %v108 = vpop.permute.xlu0 %107
  %109 = vset.pattern.permute.xlu0 1
  %110 = vperm.xlu0 %109, %v19
  %v111 = vpop.permute.xlu0 %110
  %112 = vset.pattern.permute.xlu0 1
  %113 = vperm.xlu0 %112, %v20
  %v114 = vpop.permute.xlu0 %113
  %115 = vset.pattern.permute.xlu0 1
  %116 = vperm.xlu0 %115, %v21
  %v117 = vpop.permute.xlu0 %116
  %118 = vset.pattern.permute.xlu0 1
  %119 = vperm.xlu0 %118, %v22
  %v120 = vpop.permute.xlu0 %119
  %121 = vset.pattern.permute.xlu0 1
  %122 = vperm.xlu0 %121, %v23
  %v123 = vpop.permute.xlu0 %122
  %124 = vset.pattern.permute.xlu0 1
  %125 = vperm.xlu0 %124, %v24
  %v126 = vpop.permute.xlu0 %125
  %127 = vset.pattern.permute.xlu0 1
  %128 = vperm.xlu0 %127, %v25
  %v129 = vpop.permute.xlu0 %128
  %130 = vset.pattern.permute.xlu0 1
  %131 = vperm.xlu0 %130, %v26
  %v132 = vpop.permute.xlu0 %131
  %133 = vset.pattern.permute.xlu0 1
  %134 = vperm.xlu0 %133, %v27
  %v135 = vpop.permute.xlu0 %134
  %136 = vset.pattern.permute.xlu0 1
  %137 = vperm.xlu0 %136, %v28
  %v138 = vpop.permute.xlu0 %137
  %139 = vset.pattern.permute.xlu0 1
  %140 = vperm.xlu0 %139, %v29
  %v141 = vpop.permute.xlu0 %140
  %vm142 = vcmp.eq.s32.totalorder %v13, %v96
  %vm143 = vcmp.eq.s32.totalorder %v13, %v99
  %vm144 = vcmp.eq.s32.totalorder %v13, %v102
  %vm145 = vcmp.eq.s32.totalorder %v13, %v105
  %vm146 = vcmp.eq.s32.totalorder %v13, %v108
  %vm147 = vcmp.eq.s32.totalorder %v13, %v111
  %vm148 = vcmp.eq.s32.totalorder %v13, %v114
  %vm149 = vcmp.eq.s32.totalorder %v13, %v117
  %vm150 = vcmp.eq.s32.totalorder %v13, %v120
  %vm151 = vcmp.eq.s32.totalorder %v13, %v123
  %vm152 = vcmp.eq.s32.totalorder %v13, %v126
  %vm153 = vcmp.eq.s32.totalorder %v13, %v129
  %vm154 = vcmp.eq.s32.totalorder %v13, %v132
  %vm155 = vcmp.eq.s32.totalorder %v13, %v135
  %vm156 = vcmp.eq.s32.totalorder %v13, %v138
  %vm157 = vcmp.eq.s32.totalorder %v13, %v141
  %vm158 = vmor %vm78, %vm142
  %vm159 = vmor %vm79, %vm143
  %vm160 = vmor %vm80, %vm144
  %vm161 = vmor %vm81, %vm145
  %vm162 = vmor %vm82, %vm146
  %vm163 = vmor %vm83, %vm147
  %vm164 = vmor %vm84, %vm148
  %vm165 = vmor %vm85, %vm149
  %vm166 = vmor %vm86, %vm150
  %vm167 = vmor %vm87, %vm151
  %vm168 = vmor %vm88, %vm152
  %vm169 = vmor %vm89, %vm153
  %vm170 = vmor %vm90, %vm154
  %vm171 = vmor %vm91, %vm155
  %vm172 = vmor %vm92, %vm156
  %vm173 = vmor %vm93, %vm157
  %174 = vset.pattern.permute.xlu0 2
  %175 = vperm.xlu0 %174, %v14
  %v176 = vpop.permute.xlu0 %175
  %177 = vset.pattern.permute.xlu0 2
  %178 = vperm.xlu0 %177, %v15
  %v179 = vpop.permute.xlu0 %178
  %180 = vset.pattern.permute.xlu0 2
  %181 = vperm.xlu0 %180, %v16
  %v182 = vpop.permute.xlu0 %181
  %183 = vset.pattern.permute.xlu0 2
  %184 = vperm.xlu0 %183, %v17
  %v185 = vpop.permute.xlu0 %184
  %186 = vset.pattern.permute.xlu0 2
  %187 = vperm.xlu0 %186, %v18
  %v188 = vpop.permute.xlu0 %187
  %189 = vset.pattern.permute.xlu0 2
  %190 = vperm.xlu0 %189, %v19
  %v191 = vpop.permute.xlu0 %190
  %192 = vset.pattern.permute.xlu0 2
  %193 = vperm.xlu0 %192, %v20
  %v194 = vpop.permute.xlu0 %193
  %195 = vset.pattern.permute.xlu0 2
  %196 = vperm.xlu0 %195, %v21
  %v197 = vpop.permute.xlu0 %196
  %198 = vset.pattern.permute.xlu0 2
  %199 = vperm.xlu0 %198, %v22
  %v200 = vpop.permute.xlu0 %199
  %201 = vset.pattern.permute.xlu0 2
  %202 = vperm.xlu0 %201, %v23
  %v203 = vpop.permute.xlu0 %202
  %204 = vset.pattern.permute.xlu0 2
  %205 = vperm.xlu0 %204, %v24
  %v206 = vpop.permute.xlu0 %205
  %207 = vset.pattern.permute.xlu0 2
  %208 = vperm.xlu0 %207, %v25
  %v209 = vpop.permute.xlu0 %208
  %210 = vset.pattern.permute.xlu0 2
  %211 = vperm.xlu0 %210, %v26
  %v212 = vpop.permute.xlu0 %211
  %213 = vset.pattern.permute.xlu0 2
  %214 = vperm.xlu0 %213, %v27
  %v215 = vpop.permute.xlu0 %214
  %216 = vset.pattern.permute.xlu0 2
  %217 = vperm.xlu0 %216, %v28
  %v218 = vpop.permute.xlu0 %217
  %219 = vset.pattern.permute.xlu0 2
  %220 = vperm.xlu0 %219, %v29
  %v221 = vpop.permute.xlu0 %220
  %vm222 = vcmp.eq.s32.totalorder %v13, %v176
  %vm223 = vcmp.eq.s32.totalorder %v13, %v179
  %vm224 = vcmp.eq.s32.totalorder %v13, %v182
  %vm225 = vcmp.eq.s32.totalorder %v13, %v185
  %vm226 = vcmp.eq.s32.totalorder %v13, %v188
  %vm227 = vcmp.eq.s32.totalorder %v13, %v191
  %vm228 = vcmp.eq.s32.totalorder %v13, %v194
  %vm229 = vcmp.eq.s32.totalorder %v13, %v197
  %vm230 = vcmp.eq.s32.totalorder %v13, %v200
  %vm231 = vcmp.eq.s32.totalorder %v13, %v203
  %vm232 = vcmp.eq.s32.totalorder %v13, %v206
  %vm233 = vcmp.eq.s32.totalorder %v13, %v209
  %vm234 = vcmp.eq.s32.totalorder %v13, %v212
  %vm235 = vcmp.eq.s32.totalorder %v13, %v215
  %vm236 = vcmp.eq.s32.totalorder %v13, %v218
  %vm237 = vcmp.eq.s32.totalorder %v13, %v221
  %vm238 = vmor %vm158, %vm222
  %vm239 = vmor %vm159, %vm223
  %vm240 = vmor %vm160, %vm224
  %vm241 = vmor %vm161, %vm225
  %vm242 = vmor %vm162, %vm226
  %vm243 = vmor %vm163, %vm227
  %vm244 = vmor %vm164, %vm228
  %vm245 = vmor %vm165, %vm229
  %vm246 = vmor %vm166, %vm230
  %vm247 = vmor %vm167, %vm231
  %vm248 = vmor %vm168, %vm232
  %vm249 = vmor %vm169, %vm233
  %vm250 = vmor %vm170, %vm234
  %vm251 = vmor %vm171, %vm235
  %vm252 = vmor %vm172, %vm236
  %vm253 = vmor %vm173, %vm237
  %254 = vset.pattern.permute.xlu0 3
  %255 = vperm.xlu0 %254, %v14
  %v256 = vpop.permute.xlu0 %255
  %257 = vset.pattern.permute.xlu0 3
  %258 = vperm.xlu0 %257, %v15
  %v259 = vpop.permute.xlu0 %258
  %260 = vset.pattern.permute.xlu0 3
  %261 = vperm.xlu0 %260, %v16
  %v262 = vpop.permute.xlu0 %261
  %263 = vset.pattern.permute.xlu0 3
  %264 = vperm.xlu0 %263, %v17
  %v265 = vpop.permute.xlu0 %264
  %266 = vset.pattern.permute.xlu0 3
  %267 = vperm.xlu0 %266, %v18
  %v268 = vpop.permute.xlu0 %267
  %269 = vset.pattern.permute.xlu0 3
  %270 = vperm.xlu0 %269, %v19
  %v271 = vpop.permute.xlu0 %270
  %272 = vset.pattern.permute.xlu0 3
  %273 = vperm.xlu0 %272, %v20
  %v274 = vpop.permute.xlu0 %273
  %275 = vset.pattern.permute.xlu0 3
  %276 = vperm.xlu0 %275, %v21
  %v277 = vpop.permute.xlu0 %276
  %278 = vset.pattern.permute.xlu0 3
  %279 = vperm.xlu0 %278, %v22
  %v280 = vpop.permute.xlu0 %279
  %281 = vset.pattern.permute.xlu0 3
  %282 = vperm.xlu0 %281, %v23
  %v283 = vpop.permute.xlu0 %282
  %284 = vset.pattern.permute.xlu0 3
  %285 = vperm.xlu0 %284, %v24
  %v286 = vpop.permute.xlu0 %285
  %287 = vset.pattern.permute.xlu0 3
  %288 = vperm.xlu0 %287, %v25
  %v289 = vpop.permute.xlu0 %288
  %290 = vset.pattern.permute.xlu0 3
  %291 = vperm.xlu0 %290, %v26
  %v292 = vpop.permute.xlu0 %291
  %293 = vset.pattern.permute.xlu0 3
  %294 = vperm.xlu0 %293, %v27
  %v295 = vpop.permute.xlu0 %294
  %296 = vset.pattern.permute.xlu0 3
  %297 = vperm.xlu0 %296, %v28
  %v298 = vpop.permute.xlu0 %297
  %299 = vset.pattern.permute.xlu0 3
  %300 = vperm.xlu0 %299, %v29
  %v301 = vpop.permute.xlu0 %300
  %vm302 = vcmp.eq.s32.totalorder %v13, %v256
  %vm303 = vcmp.eq.s32.totalorder %v13, %v259
  %vm304 = vcmp.eq.s32.totalorder %v13, %v262
  %vm305 = vcmp.eq.s32.totalorder %v13, %v265
  %vm306 = vcmp.eq.s32.totalorder %v13, %v268
  %vm307 = vcmp.eq.s32.totalorder %v13, %v271
  %vm308 = vcmp.eq.s32.totalorder %v13, %v274
  %vm309 = vcmp.eq.s32.totalorder %v13, %v277
  %vm310 = vcmp.eq.s32.totalorder %v13, %v280
  %vm311 = vcmp.eq.s32.totalorder %v13, %v283
  %vm312 = vcmp.eq.s32.totalorder %v13, %v286
  %vm313 = vcmp.eq.s32.totalorder %v13, %v289
  %vm314 = vcmp.eq.s32.totalorder %v13, %v292
  %vm315 = vcmp.eq.s32.totalorder %v13, %v295
  %vm316 = vcmp.eq.s32.totalorder %v13, %v298
  %vm317 = vcmp.eq.s32.totalorder %v13, %v301
  %vm318 = vmor %vm238, %vm302
  %vm319 = vmor %vm239, %vm303
  %vm320 = vmor %vm240, %vm304
  %vm321 = vmor %vm241, %vm305
  %vm322 = vmor %vm242, %vm306
  %vm323 = vmor %vm243, %vm307
  %vm324 = vmor %vm244, %vm308
  %vm325 = vmor %vm245, %vm309
  %vm326 = vmor %vm246, %vm310
  %vm327 = vmor %vm247, %vm311
  %vm328 = vmor %vm248, %vm312
  %vm329 = vmor %vm249, %vm313
  %vm330 = vmor %vm250, %vm314
  %vm331 = vmor %vm251, %vm315
  %vm332 = vmor %vm252, %vm316
  %vm333 = vmor %vm253, %vm317
  %334 = vset.pattern.permute.xlu0 4
  %335 = vperm.xlu0 %334, %v14
  %v336 = vpop.permute.xlu0 %335
  %337 = vset.pattern.permute.xlu0 4
  %338 = vperm.xlu0 %337, %v15
  %v339 = vpop.permute.xlu0 %338
  %340 = vset.pattern.permute.xlu0 4
  %341 = vperm.xlu0 %340, %v16
  %v342 = vpop.permute.xlu0 %341
  %343 = vset.pattern.permute.xlu0 4
  %344 = vperm.xlu0 %343, %v17
  %v345 = vpop.permute.xlu0 %344
  %346 = vset.pattern.permute.xlu0 4
  %347 = vperm.xlu0 %346, %v18
  %v348 = vpop.permute.xlu0 %347
  %349 = vset.pattern.permute.xlu0 4
  %350 = vperm.xlu0 %349, %v19
  %v351 = vpop.permute.xlu0 %350
  %352 = vset.pattern.permute.xlu0 4
  %353 = vperm.xlu0 %352, %v20
  %v354 = vpop.permute.xlu0 %353
  %355 = vset.pattern.permute.xlu0 4
  %356 = vperm.xlu0 %355, %v21
  %v357 = vpop.permute.xlu0 %356
  %358 = vset.pattern.permute.xlu0 4
  %359 = vperm.xlu0 %358, %v22
  %v360 = vpop.permute.xlu0 %359
  %361 = vset.pattern.permute.xlu0 4
  %362 = vperm.xlu0 %361, %v23
  %v363 = vpop.permute.xlu0 %362
  %364 = vset.pattern.permute.xlu0 4
  %365 = vperm.xlu0 %364, %v24
  %v366 = vpop.permute.xlu0 %365
  %367 = vset.pattern.permute.xlu0 4
  %368 = vperm.xlu0 %367, %v25
  %v369 = vpop.permute.xlu0 %368
  %370 = vset.pattern.permute.xlu0 4
  %371 = vperm.xlu0 %370, %v26
  %v372 = vpop.permute.xlu0 %371
  %373 = vset.pattern.permute.xlu0 4
  %374 = vperm.xlu0 %373, %v27
  %v375 = vpop.permute.xlu0 %374
  %376 = vset.pattern.permute.xlu0 4
  %377 = vperm.xlu0 %376, %v28
  %v378 = vpop.permute.xlu0 %377
  %379 = vset.pattern.permute.xlu0 4
  %380 = vperm.xlu0 %379, %v29
  %v381 = vpop.permute.xlu0 %380
  %vm382 = vcmp.eq.s32.totalorder %v13, %v336
  %vm383 = vcmp.eq.s32.totalorder %v13, %v339
  %vm384 = vcmp.eq.s32.totalorder %v13, %v342
  %vm385 = vcmp.eq.s32.totalorder %v13, %v345
  %vm386 = vcmp.eq.s32.totalorder %v13, %v348
  %vm387 = vcmp.eq.s32.totalorder %v13, %v351
  %vm388 = vcmp.eq.s32.totalorder %v13, %v354
  %vm389 = vcmp.eq.s32.totalorder %v13, %v357
  %vm390 = vcmp.eq.s32.totalorder %v13, %v360
  %vm391 = vcmp.eq.s32.totalorder %v13, %v363
  %vm392 = vcmp.eq.s32.totalorder %v13, %v366
  %vm393 = vcmp.eq.s32.totalorder %v13, %v369
  %vm394 = vcmp.eq.s32.totalorder %v13, %v372
  %vm395 = vcmp.eq.s32.totalorder %v13, %v375
  %vm396 = vcmp.eq.s32.totalorder %v13, %v378
  %vm397 = vcmp.eq.s32.totalorder %v13, %v381
  %vm398 = vmor %vm318, %vm382
  %vm399 = vmor %vm319, %vm383
  %vm400 = vmor %vm320, %vm384
  %vm401 = vmor %vm321, %vm385
  %vm402 = vmor %vm322, %vm386
  %vm403 = vmor %vm323, %vm387
  %vm404 = vmor %vm324, %vm388
  %vm405 = vmor %vm325, %vm389
  %vm406 = vmor %vm326, %vm390
  %vm407 = vmor %vm327, %vm391
  %vm408 = vmor %vm328, %vm392
  %vm409 = vmor %vm329, %vm393
  %vm410 = vmor %vm330, %vm394
  %vm411 = vmor %vm331, %vm395
  %vm412 = vmor %vm332, %vm396
  %vm413 = vmor %vm333, %vm397
  %v414 = vsel %vm398, 1, 0
  %v415 = vsel %vm399, 1, 0
  %v416 = vsel %vm400, 1, 0
  %v417 = vsel %vm401, 1, 0
  %v418 = vsel %vm402, 1, 0
  %v419 = vsel %vm403, 1, 0
  %v420 = vsel %vm404, 1, 0
  %v421 = vsel %vm405, 1, 0
  %v422 = vsel %vm406, 1, 0
  %v423 = vsel %vm407, 1, 0
  %v424 = vsel %vm408, 1, 0
  %v425 = vsel %vm409, 1, 0
  %v426 = vsel %vm410, 1, 0
  %v427 = vsel %vm411, 1, 0
  %v428 = vsel %vm412, 1, 0
  %v429 = vsel %vm413, 1, 0
  %v430 = vcvt.s32.f32 %v414
  %v431 = vcvt.s32.f32 %v415
  %v432 = vcvt.s32.f32 %v416
  %v433 = vcvt.s32.f32 %v417
  %v434 = vcvt.s32.f32 %v418
  %v435 = vcvt.s32.f32 %v419
  %v436 = vcvt.s32.f32 %v420
  %v437 = vcvt.s32.f32 %v421
  %v438 = vcvt.s32.f32 %v422
  %v439 = vcvt.s32.f32 %v423
  %v440 = vcvt.s32.f32 %v424
  %v441 = vcvt.s32.f32 %v425
  %v442 = vcvt.s32.f32 %v426
  %v443 = vcvt.s32.f32 %v427
  %v444 = vcvt.s32.f32 %v428
  %v445 = vcvt.s32.f32 %v429
  %v446 = vpack.c.bf16 %v431, %v430
  %v447 = vpack.c.bf16 %v433, %v432
  %v448 = vpack.c.bf16 %v435, %v434
  %v449 = vpack.c.bf16 %v437, %v436
  %v450 = vpack.c.bf16 %v439, %v438
  %v451 = vpack.c.bf16 %v441, %v440
  %v452 = vpack.c.bf16 %v443, %v442
  %v453 = vpack.c.bf16 %v445, %v444
  %v454 = vld [vmem:[%s1] sm:$0xff]
  %v455 = vld [vmem:[%s1 + $0x8] sm:$0xff]
  %v456 = vld [vmem:[%s1 + $0x10] sm:$0xff]
  %v457 = vld [vmem:[%s1 + $0x18] sm:$0xff]
  %v458 = vld [vmem:[%s1 + $0x20] sm:$0xff]
  %v459 = vld [vmem:[%s1 + $0x28] sm:$0xff]
  %v460 = vld [vmem:[%s1 + $0x30] sm:$0xff]
  %v461 = vld [vmem:[%s1 + $0x38] sm:$0xff]
  %v462 = vld [vmem:[%s1 + $0x40] sm:$0xff]
  %v463 = vld [vmem:[%s1 + $0x48] sm:$0xff]
  %v464 = vld [vmem:[%s1 + $0x50] sm:$0xff]
  %v465 = vld [vmem:[%s1 + $0x58] sm:$0xff]
  %v466 = vld [vmem:[%s1 + $0x60] sm:$0xff]
  %v467 = vld [vmem:[%s1 + $0x68] sm:$0xff]
  %v468 = vld [vmem:[%s1 + $0x70] sm:$0xff]
  %v469 = vld [vmem:[%s1 + $0x78] sm:$0xff]
  %v486 = vunpack.c.l.b16 %v454
  %v487 = vunpack.c.h.b16 %v454
  %v488 = vunpack.c.l.b16 %v455
  %v489 = vunpack.c.h.b16 %v455
  %v490 = vunpack.c.l.b16 %v456
  %v491 = vunpack.c.h.b16 %v456
  %v492 = vunpack.c.l.b16 %v457
  %v493 = vunpack.c.h.b16 %v457
  %v494 = vunpack.c.l.b16 %v458
  %v495 = vunpack.c.h.b16 %v458
  %v496 = vunpack.c.l.b16 %v459
  %v497 = vunpack.c.h.b16 %v459
  %v498 = vunpack.c.l.b16 %v460
  %v499 = vunpack.c.h.b16 %v460
  %v500 = vunpack.c.l.b16 %v461
  %v501 = vunpack.c.h.b16 %v461
  %v502 = vunpack.c.l.b16 %v462
  %v503 = vunpack.c.h.b16 %v462
  %v504 = vunpack.c.l.b16 %v463
  %v505 = vunpack.c.h.b16 %v463
  %v506 = vunpack.c.l.b16 %v464
  %v507 = vunpack.c.h.b16 %v464
  %v508 = vunpack.c.l.b16 %v465
  %v509 = vunpack.c.h.b16 %v465
  %v510 = vunpack.c.l.b16 %v466
  %v511 = vunpack.c.h.b16 %v466
  %v512 = vunpack.c.l.b16 %v467
  %v513 = vunpack.c.h.b16 %v467
  %v514 = vunpack.c.l.b16 %v468
  %v515 = vunpack.c.h.b16 %v468
  %v516 = vunpack.c.l.b16 %v469
  %v517 = vunpack.c.h.b16 %v469
  %v518 = vpack.c.b16 %v488, %v486
  %v519 = vpack.c.b16 %v489, %v487
  %v520 = vpack.c.b16 %v492, %v490
  %v521 = vpack.c.b16 %v493, %v491
  %v522 = vpack.c.b16 %v496, %v494
  %v523 = vpack.c.b16 %v497, %v495
  %v524 = vpack.c.b16 %v500, %v498
  %v525 = vpack.c.b16 %v501, %v499
  %v526 = vpack.c.b16 %v504, %v502
  %v527 = vpack.c.b16 %v505, %v503
  %v528 = vpack.c.b16 %v508, %v506
  %v529 = vpack.c.b16 %v509, %v507
  %v530 = vpack.c.b16 %v512, %v510
  %v531 = vpack.c.b16 %v513, %v511
  %v532 = vpack.c.b16 %v516, %v514
  %v533 = vpack.c.b16 %v517, %v515
  %550 = vmatprep.subr.bf16.mxu0 %v533
  %551 = vmatpush1.bf16.msra.mxu0 %v532
  %552 = vmatprep.subr.bf16.mxu0 %v531
  %553 = vmatpush1.bf16.msra.mxu0 %v530
  %554 = vmatprep.subr.bf16.mxu0 %v529
  %555 = vmatpush1.bf16.msra.mxu0 %v528
  %556 = vmatprep.subr.bf16.mxu0 %v527
  %557 = vmatpush1.bf16.msra.mxu0 %v526
  %558 = vmatprep.subr.bf16.mxu0 %v525
  %559 = vmatpush1.bf16.msra.mxu0 %v524
  %560 = vmatprep.subr.bf16.mxu0 %v523
  %561 = vmatpush1.bf16.msra.mxu0 %v522
  %562 = vmatprep.subr.bf16.mxu0 %v521
  %563 = vmatpush1.bf16.msra.mxu0 %v520
  %564 = vmatprep.subr.bf16.mxu0 %v519
  %565 = vmatpush1.bf16.msra.mxu0 %v518
  %566 = vmatprep.subr.bf16.mxu0 0
  %567 = vmatpush2.bf16.msra.mxu0 0
  %568 = vmatprep.subr.bf16.mxu0 0
  %569 = vmatpush2.bf16.msra.mxu0 0
  %570 = vmatprep.subr.bf16.mxu0 0
  %571 = vmatpush2.bf16.msra.mxu0 0
  %572 = vmatprep.subr.bf16.mxu0 0
  %573 = vmatpush2.bf16.msra.mxu0 0
  %574 = vmatprep.subr.bf16.mxu0 0
  %575 = vmatpush2.bf16.msra.mxu0 0
  %576 = vmatprep.subr.bf16.mxu0 0
  %577 = vmatpush2.bf16.msra.mxu0 0
  %578 = vmatprep.subr.bf16.mxu0 0
  %579 = vmatpush2.bf16.msra.mxu0 0
  %580 = vmatprep.subr.bf16.mxu0 0
  %581 = vmatpush2.bf16.msra.mxu0 0
  %582 = vmatprep.mubr.bf16.mxu0 0
  %583 = vmatmul.mubr.bf16.gmra.mxu0 %v446
  %v584 = vpop.f32.mrf.mxu0
  %v585 = vadd.f32 0.0, %v584
  %v586 = vpop.f32.mrf.mxu0
  %v587 = vadd.f32 0.0, %v586
  %v588 = vpop.f32.mrf.mxu0
  %v589 = vadd.f32 0.0, %v588
  %v590 = vpop.f32.mrf.mxu0
  %v591 = vadd.f32 0.0, %v590
  %592 = vmatprep.mubr.bf16.mxu0 0
  %593 = vmatmul.mubr.bf16.gmra.mxu0 %v447
  %v594 = vpop.f32.mrf.mxu0
  %v595 = vadd.f32 0.0, %v594
  %v596 = vpop.f32.mrf.mxu0
  %v597 = vadd.f32 0.0, %v596
  %v598 = vpop.f32.mrf.mxu0
  %v599 = vadd.f32 0.0, %v598
  %v600 = vpop.f32.mrf.mxu0
  %v601 = vadd.f32 0.0, %v600
  %602 = vmatprep.mubr.bf16.mxu0 0
  %603 = vmatmul.mubr.bf16.gmra.mxu0 %v448
  %v604 = vpop.f32.mrf.mxu0
  %v605 = vadd.f32 0.0, %v604
  %v606 = vpop.f32.mrf.mxu0
  %v607 = vadd.f32 0.0, %v606
  %v608 = vpop.f32.mrf.mxu0
  %v609 = vadd.f32 0.0, %v608
  %v610 = vpop.f32.mrf.mxu0
  %v611 = vadd.f32 0.0, %v610
  %612 = vmatprep.mubr.bf16.mxu0 0
  %613 = vmatmul.mubr.bf16.gmra.mxu0 %v449
  %v614 = vpop.f32.mrf.mxu0
  %v615 = vadd.f32 0.0, %v614
  %v616 = vpop.f32.mrf.mxu0
  %v617 = vadd.f32 0.0, %v616
  %v618 = vpop.f32.mrf.mxu0
  %v619 = vadd.f32 0.0, %v618
  %v620 = vpop.f32.mrf.mxu0
  %v621 = vadd.f32 0.0, %v620
  %622 = vmatprep.mubr.bf16.mxu0 0
  %623 = vmatmul.mubr.bf16.gmra.mxu0 %v450
  %v624 = vpop.f32.mrf.mxu0
  %v625 = vadd.f32 0.0, %v624
  %v626 = vpop.f32.mrf.mxu0
  %v627 = vadd.f32 0.0, %v626
  %v628 = vpop.f32.mrf.mxu0
  %v629 = vadd.f32 0.0, %v628
  %v630 = vpop.f32.mrf.mxu0
  %v631 = vadd.f32 0.0, %v630
  %632 = vmatprep.mubr.bf16.mxu0 0
  %633 = vmatmul.mubr.bf16.gmra.mxu0 %v451
  %v634 = vpop.f32.mrf.mxu0
  %v635 = vadd.f32 0.0, %v634
  %v636 = vpop.f32.mrf.mxu0
  %v637 = vadd.f32 0.0, %v636
  %v638 = vpop.f32.mrf.mxu0
  %v639 = vadd.f32 0.0, %v638
  %v640 = vpop.f32.mrf.mxu0
  %v641 = vadd.f32 0.0, %v640
  %642 = vmatprep.mubr.bf16.mxu0 0
  %643 = vmatmul.mubr.bf16.gmra.mxu0 %v452
  %v644 = vpop.f32.mrf.mxu0
  %v645 = vadd.f32 0.0, %v644
  %v646 = vpop.f32.mrf.mxu0
  %v647 = vadd.f32 0.0, %v646
  %v648 = vpop.f32.mrf.mxu0
  %v649 = vadd.f32 0.0, %v648
  %v650 = vpop.f32.mrf.mxu0
  %v651 = vadd.f32 0.0, %v650
  %652 = vmatprep.mubr.bf16.mxu0 0
  %653 = vmatmul.mubr.bf16.gmra.mxu0 %v453
  %v654 = vpop.f32.mrf.mxu0
  %v655 = vadd.f32 0.0, %v654
  %v656 = vpop.f32.mrf.mxu0
  %v657 = vadd.f32 0.0, %v656
  %v658 = vpop.f32.mrf.mxu0
  %v659 = vadd.f32 0.0, %v658
  %v660 = vpop.f32.mrf.mxu0
  %v661 = vadd.f32 0.0, %v660
  %662 = vdwg.mxu0
  %v663 = vpack.c.bf16 %v589, %v585
  %v664 = vpack.c.bf16 %v591, %v587
  %v665 = vpack.c.bf16 %v599, %v595
  %v666 = vpack.c.bf16 %v601, %v597
  %v667 = vpack.c.bf16 %v609, %v605
  %v668 = vpack.c.bf16 %v611, %v607
  %v669 = vpack.c.bf16 %v619, %v615
  %v670 = vpack.c.bf16 %v621, %v617
  %v671 = vpack.c.bf16 %v629, %v625
  %v672 = vpack.c.bf16 %v631, %v627
  %v673 = vpack.c.bf16 %v639, %v635
  %v674 = vpack.c.bf16 %v641, %v637
  %v675 = vpack.c.bf16 %v649, %v645
  %v676 = vpack.c.bf16 %v651, %v647
  %v677 = vpack.c.bf16 %v659, %v655
  %v678 = vpack.c.bf16 %v661, %v657
  %v695 = vunpack.c.l.b16 %v663
  %v696 = vunpack.c.l.b16 %v664
  %v697 = vunpack.c.h.b16 %v663
  %v698 = vunpack.c.h.b16 %v664
  %v699 = vunpack.c.l.b16 %v665
  %v700 = vunpack.c.l.b16 %v666
  %v701 = vunpack.c.h.b16 %v665
  %v702 = vunpack.c.h.b16 %v666
  %v703 = vunpack.c.l.b16 %v667
  %v704 = vunpack.c.l.b16 %v668
  %v705 = vunpack.c.h.b16 %v667
  %v706 = vunpack.c.h.b16 %v668
  %v707 = vunpack.c.l.b16 %v669
  %v708 = vunpack.c.l.b16 %v670
  %v709 = vunpack.c.h.b16 %v669
  %v710 = vunpack.c.h.b16 %v670
  %v711 = vunpack.c.l.b16 %v671
  %v712 = vunpack.c.l.b16 %v672
  %v713 = vunpack.c.h.b16 %v671
  %v714 = vunpack.c.h.b16 %v672
  %v715 = vunpack.c.l.b16 %v673
  %v716 = vunpack.c.l.b16 %v674
  %v717 = vunpack.c.h.b16 %v673
  %v718 = vunpack.c.h.b16 %v674
  %v719 = vunpack.c.l.b16 %v675
  %v720 = vunpack.c.l.b16 %v676
  %v721 = vunpack.c.h.b16 %v675
  %v722 = vunpack.c.h.b16 %v676
  %v723 = vunpack.c.l.b16 %v677
  %v724 = vunpack.c.l.b16 %v678
  %v725 = vunpack.c.h.b16 %v677
  %v726 = vunpack.c.h.b16 %v678
  %v727 = vpack.c.b16 %v696, %v695
  %v728 = vpack.c.b16 %v698, %v697
  %v729 = vpack.c.b16 %v700, %v699
  %v730 = vpack.c.b16 %v702, %v701
  %v731 = vpack.c.b16 %v704, %v703
  %v732 = vpack.c.b16 %v706, %v705
  %v733 = vpack.c.b16 %v708, %v707
  %v734 = vpack.c.b16 %v710, %v709
  %v735 = vpack.c.b16 %v712, %v711
  %v736 = vpack.c.b16 %v714, %v713
  %v737 = vpack.c.b16 %v716, %v715
  %v738 = vpack.c.b16 %v718, %v717
  %v739 = vpack.c.b16 %v720, %v719
  %v740 = vpack.c.b16 %v722, %v721
  %v741 = vpack.c.b16 %v724, %v723
  %v742 = vpack.c.b16 %v726, %v725
  %vm759 = vcmask 1043456
  %vm760 = vcmask 261124
  %vm761 = vmor %vm760, %vm759
  %762 = vst.msk [vmem:[%s2] sm:$0xff] %vm761, %v727
  %763 = vst.msk [vmem:[%s2 + $0x8] sm:$0xff] %vm761, %v728
  %764 = vst.msk [vmem:[%s2 + $0x10] sm:$0xff] %vm761, %v729
  %765 = vst.msk [vmem:[%s2 + $0x18] sm:$0xff] %vm761, %v730
  %766 = vst.msk [vmem:[%s2 + $0x20] sm:$0xff] %vm761, %v731
  %767 = vst.msk [vmem:[%s2 + $0x28] sm:$0xff] %vm761, %v732
  %768 = vst.msk [vmem:[%s2 + $0x30] sm:$0xff] %vm761, %v733
  %769 = vst.msk [vmem:[%s2 + $0x38] sm:$0xff] %vm761, %v734
  %770 = vst.msk [vmem:[%s2 + $0x40] sm:$0xff] %vm761, %v735
  %771 = vst.msk [vmem:[%s2 + $0x48] sm:$0xff] %vm761, %v736
  %772 = vst.msk [vmem:[%s2 + $0x50] sm:$0xff] %vm761, %v737
  %773 = vst.msk [vmem:[%s2 + $0x58] sm:$0xff] %vm761, %v738
  %774 = vst.msk [vmem:[%s2 + $0x60] sm:$0xff] %vm761, %v739
  %775 = vst.msk [vmem:[%s2 + $0x68] sm:$0xff] %vm761, %v740
  %776 = vst.msk [vmem:[%s2 + $0x70] sm:$0xff] %vm761, %v741
  %777 = vst.msk [vmem:[%s2 + $0x78] sm:$0xff] %vm761, %v742
  // Predicated region
  $region10: #{apply.1} parent=0 // pred_check
    _
  $region11: #{apply.1} parent=0 // pred_check_branch
    %779 = sbr.rel (0) target = $region13
  $region12: #{apply.1} parent=0 // pred_region
    _
  $region13: #{apply.1} parent=0 // pred_fallthru
    _
  // Predicated region
  $region14: #{apply.1} parent=0 // pred_check
    _
  $region15: #{apply.1} parent=0 // pred_check_branch
    %781 = sbr.rel (0) target = $region17
  $region16: #{apply.1} parent=0 // pred_region
    _
  $region17: #{apply.1} parent=0 // pred_fallthru
    _

</llo_original>
